<compile_context>
chip_gen: v6e
topology: v6e:2x2x1
jax: 0.10.0
libtpu: 0.0.40
codegen_flags: <defaults>
</compile_context>

<pallas_src>
import functools

import jax
import jax.numpy as jnp
import numpy as np
from jax import lax
from jax.experimental import pallas as pl
from jax.experimental.pallas import tpu as pltpu


def _divdis_mi_kernel(logits_ref, s_ref, st_ref, *rest,
                      heads, dim, batch, tb, binary, use_bf16):
    """One grid step: per-head softmax of a batch tile + P^T P accumulation.

    Epilogue (last step): KL grid + strict-upper-triangle nonzero mean.
    """
    if binary:
        place_ref, out_ref, joint_acc = rest
    else:
        out_ref, joint_acc = rest

    i = pl.program_id(0)
    nsteps = pl.num_programs(0)

    @pl.when(i == 0)
    def _init():
        joint_acc[...] = jnp.zeros_like(joint_acc)

    s = s_ref[...]                                   # [heads, HD] segment one-hot
    st = st_ref[...]                                 # [HD, heads]

    # --- per-head softmax, lane-dense (segmented) -------------------------
    if binary:
        # stream [tb, heads]; per-segment columns are {x_h, 0}, so the
        # per-segment max is simply max(x_h, 0); place x_h in column 2h
        # (column 2h+1 stays 0) so the segmented softmax reproduces
        # [sigmoid(x_h), 1 - sigmoid(x_h)].
        x_in = logits_ref[...].astype(jnp.float32)                       # [tb, heads]
        segmax = jnp.maximum(x_in, 0.0)                                  # [tb, heads]
        x = jnp.dot(x_in, place_ref[...],
                    preferred_element_type=jnp.float32)                  # [tb, HD]
    else:
        x = logits_ref[...].astype(jnp.float32)                          # [tb, HD]
        segmax = jnp.max(x.reshape(tb, heads, dim), axis=-1)             # [tb, heads]

    shift = jnp.dot(segmax, s, preferred_element_type=jnp.float32)       # [tb, HD]
    e = jnp.exp(x - shift)                                               # [tb, HD]
    denom = jnp.dot(e, st, preferred_element_type=jnp.float32)           # [tb, heads]
    # tiny per-head reciprocal (EUP) instead of a full-width [tb, HD] divide;
    # exact reciprocal on the f32 path, approx (free EUP slot) on the bf16 path.
    inv = pl.reciprocal(denom, approx=use_bf16)                          # [tb, heads]
    inv_full = jnp.dot(inv, s, preferred_element_type=jnp.float32)       # [tb, HD]
    p = e * inv_full                                                     # [tb, HD]

    acc_in_dtype = jnp.bfloat16 if use_bf16 else jnp.float32

    def _accumulate(pv):
        pv = pv.astype(acc_in_dtype)
        # P^T P via lhs-contracted MXU matmul (f32 accumulate).
        joint_acc[...] += lax.dot_general(
            pv, pv, dimension_numbers=(((0,), (0,)), ((), ())),
            preferred_element_type=jnp.float32)                          # [HD, HD]

    if batch % tb != 0:
        # mask only on the final (partial) tile; steady-state loop is unmasked.
        @pl.when(i < nsteps - 1)
        def _acc_full():
            _accumulate(p)

        @pl.when(i == nsteps - 1)
        def _acc_masked():
            row_ids = i * tb + lax.broadcasted_iota(jnp.int32, (tb, 1), 0)
            _accumulate(jnp.where(row_ids < batch, p, 0.0))
    else:
        _accumulate(p)

    # --- epilogue: KL grid + reduction ------------------------------------
    @pl.when(i == nsteps - 1)
    def _finalize():
        inv_b = jnp.float32(1.0 / batch)
        inv_h = jnp.float32(1.0 / heads)
        joint = joint_acc[...] * inv_b                                   # [HD, HD]

        # marginals from row/col sums: sum_j joint[i, j] = heads * m[i]
        log_mcol = jnp.log(jnp.sum(joint, axis=1, keepdims=True) * inv_h)  # [HD, 1]
        log_mrow = jnp.log(jnp.sum(joint, axis=0, keepdims=True) * inv_h)  # [1, HD]

        # only joint*log(joint) at full [HD, HD] size; marginal terms folded
        # into block sums with the tiny S matrices (no full-size broadcasts).
        jlogj = joint * jnp.log(joint)                                   # [HD, HD]
        t_joint = jnp.dot(jnp.dot(s, jlogj, preferred_element_type=jnp.float32),
                          st, preferred_element_type=jnp.float32)        # [h, h]
        col_blk = jnp.dot(joint, st, preferred_element_type=jnp.float32)  # [HD, h]
        t_col = jnp.dot(s, log_mcol * col_blk,
                        preferred_element_type=jnp.float32)              # [h, h]
        row_blk = jnp.dot(s, joint, preferred_element_type=jnp.float32)  # [h, HD]
        t_row = jnp.dot(row_blk * log_mrow, st,
                        preferred_element_type=jnp.float32)              # [h, h]

        kl_grid = t_joint - t_col - t_row                                # [h, h]
        repulsion = -kl_grid

        # reduction='mean': strict upper triangle, keep nonzeros, loss = -mean
        hi = lax.broadcasted_iota(jnp.int32, (heads, heads), 0)
        hj = lax.broadcasted_iota(jnp.int32, (heads, heads), 1)
        vals = jnp.where(hj > hi, repulsion, 0.0)
        nz_count = jnp.sum(jnp.where(vals != 0.0, 1.0, 0.0))
        loss = -(jnp.sum(vals) / nz_count)

        out_ref[...] = jnp.broadcast_to(loss, (1, 1)).astype(jnp.float32)


def _choose_tb_and_vmem(batch, hd, heads, in_width, in_bytes, max_batch_tile=None):
    """Generation-aware batch-tile size and explicit VMEM limit."""
    phys = 64 * 1024 * 1024                      # conservative default (v7x)
    try:
        info = pltpu.get_tpu_info()
        phys = int(getattr(info, "vmem_capacity_bytes", phys))
    except Exception:
        pass
    if phys < (16 << 20):
        phys = 64 * 1024 * 1024
    budget = (phys * 3) // 4                     # headroom for compiler scratch

    acc_bytes = hd * hd * 4                      # resident joint accumulator (f32)
    resident = 8 * heads * hd * 4                # S / S^T / place, double-buffered
    reserve = 2 * 1024 * 1024
    # per batch-row cost: double-buffered streamed tile (real dtype) + ~5 f32
    # [hd]-wide transients (x, shift/e, inv_full, p, matmul staging).
    per_row = 2 * in_width * in_bytes + 5 * hd * 4

    avail = budget - acc_bytes - resident - reserve
    max_rows = (avail // per_row) if avail > per_row * 8 else 8
    tb = min(batch, int(max_rows), 8192)
    if max_batch_tile is not None:
        tb = max(1, min(tb, max_batch_tile))
    if tb < batch:
        tb = max(8, (tb // 8) * 8)               # tiled sublane dim must be 8-aligned
    else:
        tb = batch

    usage = acc_bytes + resident + tb * per_row + reserve
    vmem_limit = int(min(phys, max(budget, usage)))
    return tb, vmem_limit


def divdis_loss(logits, heads, mode="mi", reduction="mean", *,
                joint_matmul_dtype=None, max_batch_tile=None):
    """Pallas implementation of DivDisLoss.forward (mode='mi', reduction='mean')."""
    if mode != "mi" or reduction != "mean":
        # TODO(synk): 'l1' mode and 'min_each' reduction not implemented.
        raise NotImplementedError("only mode='mi', reduction='mean' supported")

    B, N = logits.shape
    binary = (N == heads)
    if binary:
        dim = 2                                   # sigmoid -> [p, 1-p]
    else:
        assert N % heads == 0
        dim = N // heads
    hd = heads * dim

    if joint_matmul_dtype is None:
        use_bf16 = hd >= 128                      # MXU fast path where it matters
    else:
        use_bf16 = (jnp.dtype(joint_matmul_dtype) == jnp.dtype(jnp.bfloat16))

    in_width = heads if binary else hd            # binary path streams raw logits
    in_bytes = jnp.dtype(logits.dtype).itemsize
    tb, vmem_limit = _choose_tb_and_vmem(B, hd, heads, in_width, in_bytes,
                                         max_batch_tile=max_batch_tile)
    grid = (pl.cdiv(B, tb),)

    # host-precomputed head-segment matrices (tiny), passed in once
    seg = (np.arange(hd)[None, :] // dim) == np.arange(heads)[:, None]
    s_mat = jnp.asarray(seg, dtype=jnp.float32)            # [heads, HD]
    st_mat = jnp.asarray(seg.T, dtype=jnp.float32)         # [HD, heads]

    in_specs = [
        pl.BlockSpec((tb, in_width), lambda i: (i, 0)),     # streamed logits tile
        pl.BlockSpec((heads, hd), lambda i: (0, 0)),        # S (resident)
        pl.BlockSpec((hd, heads), lambda i: (0, 0)),        # S^T (resident)
    ]
    args = [logits, s_mat, st_mat]
    if binary:
        place = np.zeros((heads, hd), dtype=np.float32)     # head h -> column 2h
        place[np.arange(heads), np.arange(heads) * dim] = 1.0
        in_specs.append(pl.BlockSpec((heads, hd), lambda i: (0, 0)))
        args.append(jnp.asarray(place))

    kernel = functools.partial(_divdis_mi_kernel, heads=heads, dim=dim, batch=B,
                               tb=tb, binary=binary, use_bf16=use_bf16)
    out = pl.pallas_call(
        kernel,
        out_shape=jax.ShapeDtypeStruct((1, 1), jnp.float32),
        grid_spec=pltpu.PrefetchScalarGridSpec(
            num_scalar_prefetch=0,
            grid=grid,
            in_specs=in_specs,
            out_specs=pl.BlockSpec((1, 1), lambda i: (0, 0)),
            scratch_shapes=[pltpu.VMEM((hd, hd), jnp.float32)],  # joint accumulator
        ),
        compiler_params=pltpu.CompilerParams(
            dimension_semantics=("arbitrary",),
            vmem_limit_bytes=vmem_limit,
        ),
    )(*args)
    return out[0, 0]


def _divdis_loss_ref(logits, heads):
    """Pure-JAX reference mirroring the PyTorch module (mode='mi', reduction='mean')."""
    B, N = logits.shape
    if N == heads:
        pred = jax.nn.sigmoid(logits.astype(jnp.float32))[..., None]
        probs = jnp.concatenate([pred, 1.0 - pred], axis=-1)            # [B, H, 2]
    else:
        dim = N // heads
        probs = jax.nn.softmax(
            logits.reshape(B, heads, dim).astype(jnp.float32), axis=-1)
    marginal = probs.mean(axis=0)                                       # [H, D]
    marg = jnp.einsum("hd,ge->hgde", marginal, marginal)                # [H, H, D, D]
    joint = jnp.einsum("bhd,bge->bhgde", probs, probs).mean(axis=0)     # [H, H, D, D]
    kl = (joint * (jnp.log(joint) - jnp.log(marg))).sum((-1, -2))       # [H, H]
    repulsion = -kl
    H = heads
    upper = jnp.triu(jnp.ones((H, H)), k=1) > 0
    vals = jnp.where(upper, repulsion, 0.0)
    cnt = jnp.sum((vals != 0.0).astype(jnp.float32))
    return -(jnp.sum(vals) / cnt)


if __name__ == "__main__":
    key = jax.random.PRNGKey(0)
    k0, k1, k2, k3 = jax.random.split(key, 4)

    # 1) small multi-class case (HD < 128 -> f32 joint path, exact reciprocal)
    B, heads, dim = 8, 4, 8                    # logits: [8, 32]
    logits = jax.random.normal(k0, (B, heads * dim), dtype=jnp.float32)
    loss = jax.block_until_ready(divdis_loss(logits, heads))
    ref = jax.block_until_ready(_divdis_loss_ref(logits, heads))
    np.testing.assert_allclose(np.asarray(loss), np.asarray(ref), rtol=5e-4, atol=1e-5)

    # 2) binary sigmoid path: streams [B, heads] directly (no HBM zero stack)
    Bb, hb = 16, 4
    blogits = jax.random.normal(k1, (Bb, hb), dtype=jnp.float32)
    bloss = jax.block_until_ready(divdis_loss(blogits, hb))
    bref = jax.block_until_ready(_divdis_loss_ref(blogits, hb))
    np.testing.assert_allclose(np.asarray(bloss), np.asarray(bref), rtol=5e-4, atol=1e-5)

    # 3) multi-step grid with a partial final tile (exercises masked accumulation)
    Bp = 20
    plogits = jax.random.normal(k2, (Bp, heads * dim), dtype=jnp.float32)
    ploss = jax.block_until_ready(divdis_loss(plogits, heads, max_batch_tile=8))
    pref = jax.block_until_ready(_divdis_loss_ref(plogits, heads))
    np.testing.assert_allclose(np.asarray(ploss), np.asarray(pref), rtol=5e-4, atol=1e-5)

    # 4) larger HD exercises the bf16 joint-matmul MXU fast path (looser tol)
    B2, heads2, dim2 = 64, 4, 64               # logits: [64, 256]
    logits2 = jax.random.normal(k3, (B2, heads2 * dim2), dtype=jnp.float32)
    loss2 = jax.block_until_ready(divdis_loss(logits2, heads2))
    ref2 = jax.block_until_ready(_divdis_loss_ref(logits2, heads2))
    np.testing.assert_allclose(np.asarray(loss2), np.asarray(ref2), rtol=3e-2, atol=2e-3)

    print("KERNEL_OK")
</pallas_src>

<mosaic_0001>
module attributes {stable_mosaic.version = 11 : i64} {
  func.func @_divdis_mi_kernel(%arg0: i32, %arg1: memref<8x32xf32, #tpu.memory_space<vmem>>, %arg2: memref<4x32xf32, #tpu.memory_space<vmem>>, %arg3: memref<32x4xf32, #tpu.memory_space<vmem>>, %arg4: memref<1x1xf32, #tpu.memory_space<vmem>>, %arg5: memref<32x32xf32, #tpu.memory_space<vmem>>) attributes {dimension_semantics = [#tpu.dimension_semantics<arbitrary>], iteration_bounds = array<i64: 1>, scalar_prefetch = 0 : i64, scratch_operands = 1 : i64, tpu.core_type = #tpu.core_type<tc>, window_params = [{transform_indices = @transform_0, window_bounds = array<i64: 8, 32>}, {pipeline_mode = #tpu.pipeline_mode<synchronous>, transform_indices = @transform_1, window_bounds = array<i64: 4, 32>}, {pipeline_mode = #tpu.pipeline_mode<synchronous>, transform_indices = @transform_2, window_bounds = array<i64: 32, 4>}, {pipeline_mode = #tpu.pipeline_mode<synchronous>, transform_indices = @transform_3, window_bounds = array<i64: 1, 1>}]} {
    %c0_i32 = arith.constant 0 : i32
    %0 = arith.cmpi eq, %arg0, %c0_i32 : i32
    %1 = arith.extui %0 : i1 to i32
    %c0_i32_0 = arith.constant 0 : i32
    %2 = arith.cmpi ne, %1, %c0_i32_0 : i32
    scf.if %2 {
      %cst_16 = arith.constant 0.000000e+00 : f32
      %22 = vector.broadcast %cst_16 : f32 to vector<32x32xf32>
      %c0_17 = arith.constant 0 : index
      %c0_18 = arith.constant 0 : index
      %23 = vector.load %arg5[%c0_17, %c0_18] : memref<32x32xf32, #tpu.memory_space<vmem>>, vector<32x32xf32>
      tpu.vector_store %arg5[%c0_17, %c0_18], %22 {strides = array<i32>} : memref<32x32xf32, #tpu.memory_space<vmem>>, vector<32x32xf32>,
    } else {
    }
    %c0 = arith.constant 0 : index
    %c0_1 = arith.constant 0 : index
    %3 = vector.load %arg2[%c0, %c0_1] : memref<4x32xf32, #tpu.memory_space<vmem>>, vector<4x32xf32>
    %c0_2 = arith.constant 0 : index
    %c0_3 = arith.constant 0 : index
    %4 = vector.load %arg3[%c0_2, %c0_3] : memref<32x4xf32, #tpu.memory_space<vmem>>, vector<32x4xf32>
    %c0_4 = arith.constant 0 : index
    %c0_5 = arith.constant 0 : index
    %5 = vector.load %arg1[%c0_4, %c0_5] : memref<8x32xf32, #tpu.memory_space<vmem>>, vector<8x32xf32>
    %6 = vector.shape_cast %5 : vector<8x32xf32> to vector<8x4x8xf32>
    %cst = arith.constant dense<0xFF800000> : vector<8x4xf32>
    %7 = vector.multi_reduction <maximumf>, %6, %cst [2] : vector<8x4x8xf32> to vector<8x4xf32>
    %cst_6 = arith.constant dense<0.000000e+00> : vector<8x32xf32>
    %8 = tpu.matmul %7, %3, %cst_6 {dimension_numbers = #tpu.dot_dimension_numbers<[1], [0], [0], [1], [0, 0, 1, 1], [], []>} : vector<8x4xf32>, vector<4x32xf32>, vector<8x32xf32> -> vector<8x32xf32>
    %9 = arith.subf %5, %8 : vector<8x32xf32>
    %10 = math.exp %9 : vector<8x32xf32>
    %cst_7 = arith.constant dense<0.000000e+00> : vector<8x4xf32>
    %11 = tpu.matmul %10, %4, %cst_7 {dimension_numbers = #tpu.dot_dimension_numbers<[1], [0], [0], [1], [0, 0, 1, 1], [], []>} : vector<8x32xf32>, vector<32x4xf32>, vector<8x4xf32> -> vector<8x4xf32>
    %12 = tpu.reciprocal %11 : vector<8x4xf32> -> vector<8x4xf32>
    %cst_8 = arith.constant dense<0.000000e+00> : vector<8x32xf32>
    %13 = tpu.matmul %12, %3, %cst_8 {dimension_numbers = #tpu.dot_dimension_numbers<[1], [0], [0], [1], [0, 0, 1, 1], [], []>} : vector<8x4xf32>, vector<4x32xf32>, vector<8x32xf32> -> vector<8x32xf32>
    %14 = arith.mulf %10, %13 : vector<8x32xf32>
    %c0_9 = arith.constant 0 : index
    %c0_10 = arith.constant 0 : index
    %15 = vector.load %arg5[%c0_9, %c0_10] : memref<32x32xf32, #tpu.memory_space<vmem>>, vector<32x32xf32>
    %cst_11 = arith.constant dense<0.000000e+00> : vector<32x32xf32>
    %16 = tpu.matmul %14, %14, %cst_11 {dimension_numbers = #tpu.dot_dimension_numbers<[0], [0], [1], [1], [0, 1, 1, 1], [], []>} : vector<8x32xf32>, vector<8x32xf32>, vector<32x32xf32> -> vector<32x32xf32>
    %17 = arith.addf %15, %16 : vector<32x32xf32>
    %c0_12 = arith.constant 0 : index
    %c0_13 = arith.constant 0 : index
    %18 = vector.load %arg5[%c0_12, %c0_13] : memref<32x32xf32, #tpu.memory_space<vmem>>, vector<32x32xf32>
    tpu.vector_store %arg5[%c0_12, %c0_13], %17 {strides = array<i32>} : memref<32x32xf32, #tpu.memory_space<vmem>>, vector<32x32xf32>,
    %c0_i32_14 = arith.constant 0 : i32
    %19 = arith.cmpi eq, %arg0, %c0_i32_14 : i32
    %20 = arith.extui %19 : i1 to i32
    %c0_i32_15 = arith.constant 0 : i32
    %21 = arith.cmpi ne, %20, %c0_i32_15 : i32
    scf.if %21 {
      %c0_16 = arith.constant 0 : index
      %c0_17 = arith.constant 0 : index
      %22 = vector.load %arg5[%c0_16, %c0_17] : memref<32x32xf32, #tpu.memory_space<vmem>>, vector<32x32xf32>
      %cst_18 = arith.constant 1.250000e-01 : f32
      %23 = vector.broadcast %cst_18 : f32 to vector<32x32xf32>
      %24 = arith.mulf %22, %23 : vector<32x32xf32>
      %cst_19 = arith.constant dense<0.000000e+00> : vector<32xf32>
      %25 = vector.multi_reduction <add>, %24, %cst_19 [1] : vector<32x32xf32> to vector<32xf32>
      %26 = vector.shape_cast %25 : vector<32xf32> to vector<32x1xf32>
      %cst_20 = arith.constant 2.500000e-01 : f32
      %27 = vector.broadcast %cst_20 : f32 to vector<32x1xf32>
      %28 = arith.mulf %26, %27 : vector<32x1xf32>
      %29 = math.log %28 : vector<32x1xf32>
      %cst_21 = arith.constant dense<0.000000e+00> : vector<32xf32>
      %30 = vector.multi_reduction <add>, %24, %cst_21 [0] : vector<32x32xf32> to vector<32xf32>
      %31 = vector.shape_cast %30 : vector<32xf32> to vector<1x32xf32>
      %cst_22 = arith.constant 2.500000e-01 : f32
      %32 = vector.broadcast %cst_22 : f32 to vector<1x32xf32>
      %33 = arith.mulf %31, %32 : vector<1x32xf32>
      %34 = math.log %33 : vector<1x32xf32>
      %35 = math.log %24 : vector<32x32xf32>
      %36 = arith.mulf %24, %35 : vector<32x32xf32>
      %cst_23 = arith.constant dense<0.000000e+00> : vector<4x32xf32>
      %37 = tpu.matmul %3, %36, %cst_23 {dimension_numbers = #tpu.dot_dimension_numbers<[1], [0], [0], [1], [0, 0, 1, 1], [], []>} : vector<4x32xf32>, vector<32x32xf32>, vector<4x32xf32> -> vector<4x32xf32>
      %cst_24 = arith.constant dense<0.000000e+00> : vector<4x4xf32>
      %38 = tpu.matmul %37, %4, %cst_24 {dimension_numbers = #tpu.dot_dimension_numbers<[1], [0], [0], [1], [0, 0, 1, 1], [], []>} : vector<4x32xf32>, vector<32x4xf32>, vector<4x4xf32> -> vector<4x4xf32>
      %cst_25 = arith.constant dense<0.000000e+00> : vector<32x4xf32>
      %39 = tpu.matmul %24, %4, %cst_25 {dimension_numbers = #tpu.dot_dimension_numbers<[1], [0], [0], [1], [0, 0, 1, 1], [], []>} : vector<32x32xf32>, vector<32x4xf32>, vector<32x4xf32> -> vector<32x4xf32>
      %40 = vector.broadcast %29 : vector<32x1xf32> to vector<32x4xf32>
      %41 = arith.mulf %40, %39 : vector<32x4xf32>
      %cst_26 = arith.constant dense<0.000000e+00> : vector<4x4xf32>
      %42 = tpu.matmul %3, %41, %cst_26 {dimension_numbers = #tpu.dot_dimension_numbers<[1], [0], [0], [1], [0, 0, 1, 1], [], []>} : vector<4x32xf32>, vector<32x4xf32>, vector<4x4xf32> -> vector<4x4xf32>
      %cst_27 = arith.constant dense<0.000000e+00> : vector<4x32xf32>
      %43 = tpu.matmul %3, %24, %cst_27 {dimension_numbers = #tpu.dot_dimension_numbers<[1], [0], [0], [1], [0, 0, 1, 1], [], []>} : vector<4x32xf32>, vector<32x32xf32>, vector<4x32xf32> -> vector<4x32xf32>
      %44 = vector.broadcast %34 : vector<1x32xf32> to vector<4x32xf32>
      %45 = arith.mulf %43, %44 : vector<4x32xf32>
      %cst_28 = arith.constant dense<0.000000e+00> : vector<4x4xf32>
      %46 = tpu.matmul %45, %4, %cst_28 {dimension_numbers = #tpu.dot_dimension_numbers<[1], [0], [0], [1], [0, 0, 1, 1], [], []>} : vector<4x32xf32>, vector<32x4xf32>, vector<4x4xf32> -> vector<4x4xf32>
      %47 = arith.subf %38, %42 : vector<4x4xf32>
      %48 = arith.subf %47, %46 : vector<4x4xf32>
      %cst_29 = arith.constant 0.000000e+00 : f32
      %49 = vector.broadcast %cst_29 : f32 to vector<4x4xf32>
      %50 = arith.subf %49, %48 : vector<4x4xf32>
      %51 = tpu.iota {dimensions = array<i32: 0>} : vector<4x4xi32>
      %52 = tpu.iota {dimensions = array<i32: 1>} : vector<4x4xi32>
      %53 = arith.cmpi sgt, %52, %51 : vector<4x4xi32>
      %cst_30 = arith.constant 0.000000e+00 : f32
      %54 = vector.broadcast %cst_30 : f32 to vector<4x4xf32>
      %55 = arith.select %53, %50, %54 : vector<4x4xi1>, vector<4x4xf32>
      %cst_31 = arith.constant 0.000000e+00 : f32
      %56 = vector.broadcast %cst_31 : f32 to vector<4x4xf32>
      %57 = arith.cmpf one, %55, %56 : vector<4x4xf32>
      %cst_32 = arith.constant 1.000000e+00 : f32
      %cst_33 = arith.constant 0.000000e+00 : f32
      %58 = vector.broadcast %cst_32 : f32 to vector<4x4xf32>
      %59 = vector.broadcast %cst_33 : f32 to vector<4x4xf32>
      %60 = arith.select %57, %58, %59 : vector<4x4xi1>, vector<4x4xf32>
      %61 = vector.shape_cast %60 : vector<4x4xf32> to vector<1x4x4xf32>
      %cst_34 = arith.constant dense<0.000000e+00> : vector<1xf32>
      %62 = vector.multi_reduction <add>, %61, %cst_34 [1, 2] : vector<1x4x4xf32> to vector<1xf32>
      %63 = vector.shape_cast %62 : vector<1xf32> to vector<1x1x1xf32>
      %64 = vector.extract %63[0, 0, 0] : f32 from vector<1x1x1xf32>
      %65 = vector.shape_cast %55 : vector<4x4xf32> to vector<1x4x4xf32>
      %cst_35 = arith.constant dense<0.000000e+00> : vector<1xf32>
      %66 = vector.multi_reduction <add>, %65, %cst_35 [1, 2] : vector<1x4x4xf32> to vector<1xf32>
      %67 = vector.shape_cast %66 : vector<1xf32> to vector<1x1x1xf32>
      %68 = vector.extract %67[0, 0, 0] : f32 from vector<1x1x1xf32>
      %69 = arith.divf %68, %64 : f32
      %cst_36 = arith.constant 0.000000e+00 : f32
      %70 = arith.subf %cst_36, %69 : f32
      %71 = vector.broadcast %70 : f32 to vector<1x1xf32>
      %c0_37 = arith.constant 0 : index
      %c0_38 = arith.constant 0 : index
      %72 = vector.load %arg4[%c0_37, %c0_38] : memref<1x1xf32, #tpu.memory_space<vmem>>, vector<1x1xf32>
      tpu.vector_store %arg4[%c0_37, %c0_38], %71 {strides = array<i32>} : memref<1x1xf32, #tpu.memory_space<vmem>>, vector<1x1xf32>,
    } else {
    }
    return
  }
  func.func @transform_0(%arg0: i32) -> (i32, i32) {
    %c0_i32 = arith.constant 0 : i32
    %c0_i32_0 = arith.constant 0 : i32
    return %arg0, %c0_i32 : i32, i32
  }
  func.func @transform_1(%arg0: i32) -> (i32, i32) {
    %c0_i32 = arith.constant 0 : i32
    %c0_i32_0 = arith.constant 0 : i32
    %c0_i32_1 = arith.constant 0 : i32
    return %c0_i32, %c0_i32_0 : i32, i32
  }
  func.func @transform_2(%arg0: i32) -> (i32, i32) {
    %c0_i32 = arith.constant 0 : i32
    %c0_i32_0 = arith.constant 0 : i32
    %c0_i32_1 = arith.constant 0 : i32
    return %c0_i32, %c0_i32_0 : i32, i32
  }
  func.func @transform_3(%arg0: i32) -> (i32, i32) {
    %c0_i32 = arith.constant 0 : i32
    %c0_i32_0 = arith.constant 0 : i32
    %c0_i32_1 = arith.constant 0 : i32
    return %c0_i32, %c0_i32_0 : i32, i32
  }
}

</mosaic_0001>

<llo_original>
// kernel: tpu_custom_call.1
$region0: #{tpu_custom_call.1}
  #allocation0 [shape = 'u32[]', space=smem, size = 0x4, offset = 0x4, fixed_abs, tag = 'smem constant byte address 0x4 - core index']
  #allocation1 [shape = 'u32[144,128]{1,0:T(1,128)}', space=vmem, size = 0x12000, scoped, tag = 'internal scratch']
  #allocation2 [shape = 'f32[32,32]{1,0:T(8,128)}', space=vmem, size = 0x4000, scoped, tag = 'scratch operand']
  %s0 = inlined_call_operand.vmem [shape: f32[8,32], index: 0, kind: input, shape index: {}]
  %s1 = inlined_call_operand.vmem [shape: f32[4,32], index: 1, kind: input, shape index: {}]
  %s2 = inlined_call_operand.vmem [shape: f32[32,4], index: 2, kind: input, shape index: {}]
  %s3 = inlined_call_operand.hbm [shape: f32[1,1], index: 3, kind: output, shape index: {}]
  %s4 = sld [smem:[#allocation0]]
  $region30: #{tpu_custom_call.1} parent=0
    _
  %s6 = ssub.s32 1, %s4
  %s7 = scalar_select 0, %s6, %s4
  $region1: #{tpu_custom_call.1} parent=0
    #allocation3 [shape = 'u8[512]{0}', space=vmem, size = 0x400, scoped, tag = 'output window, operand 0, single buffered']
    #allocation4 [shape = 's32[1]{0}', space=sflag, size = 0x4, scoped, tag = 'scoped memory for tpu_custom_call.1']
    %8 = vsyncpa [#allocation4], 0
    // Predicated region
    $region2: #{tpu_custom_call.1} parent=1 // pred_check
      _
    $region3: #{tpu_custom_call.1} parent=1 // pred_check_branch
      %10 = sbr.rel (0) target = $region5
    $region4: #{tpu_custom_call.1} parent=1 // pred_region
      _
    $region5: #{tpu_custom_call.1} parent=1 // pred_fallthru
      _
    // Predicated region
    $region6: #{tpu_custom_call.1} parent=1 // pred_check
      _
    $region7: #{tpu_custom_call.1} parent=1 // pred_check_branch
      %12 = sbr.rel (0) target = $region9
    $region8: #{tpu_custom_call.1} parent=1 // pred_region
      _
    $region9: #{tpu_custom_call.1} parent=1 // pred_fallthru
      _
    // Predicated region
    $region10: #{tpu_custom_call.1} parent=1 // pred_check
      _
    $region11: #{tpu_custom_call.1} parent=1 // pred_check_branch
      %14 = sbr.rel (0) target = $region13
    $region12: #{tpu_custom_call.1} parent=1 // pred_region
      _
    $region13: #{tpu_custom_call.1} parent=1 // pred_fallthru
      _
    %p15 = scmp.eq.s32.totalorder 0, 0
    // Predicated region
    $region14: #{tpu_custom_call.1} parent=1 // pred_check
      %p16 = pneg %p15
    $region15: #{tpu_custom_call.1} parent=1 // pred_check_branch
      %18 = sbr.rel (%p16) target = $region17
    $region16: #{tpu_custom_call.1} parent=1 // pred_region
      %vm19 = vcmask 261120
      %20 = vst.msk [vmem:[#allocation2] sm:$0xff] %vm19, 0.0
      %21 = vst.msk [vmem:[#allocation2 + $0x8] sm:$0xff] %vm19, 0.0
      %22 = vst.msk [vmem:[#allocation2 + $0x10] sm:$0xff] %vm19, 0.0
      %23 = vst.msk [vmem:[#allocation2 + $0x18] sm:$0xff] %vm19, 0.0
    $region17: #{tpu_custom_call.1} parent=1 // pred_fallthru
      _
    %v24 = vld [vmem:[%s1] sm:$0xf]
    %v25 = vld [vmem:[%s2] sm:$0xff]
    %v26 = vld [vmem:[%s2 + $0x8] sm:$0xff]
    %v27 = vld [vmem:[%s2 + $0x10] sm:$0xff]
    %v28 = vld [vmem:[%s2 + $0x18] sm:$0xff]
    %v29 = vld [vmem:[%s0] sm:$0xff]
    %31 = vrot.lane.b32.xlu0 %v29, 120
    %v32 = vpop.permute.xlu0 %31
    %34 = vrot.lane.b32.xlu0 %v29, 112
    %v35 = vpop.permute.xlu0 %34
    %37 = vrot.lane.b32.xlu0 %v29, 104
    %v38 = vpop.permute.xlu0 %37
    %v40 = vcombine.low %v29, %v35
    %v41 = vcombine.high %v29, %v35
    %v43 = vunpack.c.l.s4 1983009808
    %v44 = vunpack.c.0.s8 %v43
    %v45 = vlaneseq
    %v46 = vshrl.u32 %v45, 7
    %v47 = vsub.s32 %v44, %v46
    %v48 = vrot.slane %v40, %v47
    %v50 = vunpack.c.l.s4 1983009808
    %v51 = vunpack.c.0.s8 %v50
    %v52 = vlaneseq
    %v53 = vshrl.u32 %v52, 7
    %v54 = vsub.s32 %v51, %v53
    %v55 = vrot.slane %v41, %v54
    %v56 = vcombine.low %v32, %v38
    %v57 = vcombine.high %v32, %v38
    %v59 = vunpack.c.l.s4 1983009808
    %v60 = vunpack.c.0.s8 %v59
    %v61 = vlaneseq
    %v62 = vshrl.u32 %v61, 7
    %v63 = vsub.s32 %v60, %v62
    %v64 = vrot.slane %v56, %v63
    %v66 = vunpack.c.l.s4 1983009808
    %v67 = vunpack.c.0.s8 %v66
    %v68 = vlaneseq
    %v69 = vshrl.u32 %v68, 7
    %v70 = vsub.s32 %v67, %v69
    %v71 = vrot.slane %v57, %v70
    %v72 = vcombine.low %v48, %v64
    %v73 = vcombine.high %v48, %v64
    %v75 = vunpack.c.l.s4 1934713408
    %v76 = vunpack.c.0.s8 %v75
    %v77 = vlaneseq
    %v78 = vshrl.u32 %v77, 7
    %v79 = vsub.s32 %v76, %v78
    %v80 = vrot.slane %v72, %v79
    %v82 = vunpack.c.l.s4 1934713408
    %v83 = vunpack.c.0.s8 %v82
    %v84 = vlaneseq
    %v85 = vshrl.u32 %v84, 7
    %v86 = vsub.s32 %v83, %v85
    %v87 = vrot.slane %v73, %v86
    %v88 = vcombine.low %v55, %v71
    %v89 = vcombine.high %v55, %v71
    %v91 = vunpack.c.l.s4 1934713408
    %v92 = vunpack.c.0.s8 %v91
    %v93 = vlaneseq
    %v94 = vshrl.u32 %v93, 7
    %v95 = vsub.s32 %v92, %v94
    %v96 = vrot.slane %v88, %v95
    %v98 = vunpack.c.l.s4 1934713408
    %v99 = vunpack.c.0.s8 %v98
    %v100 = vlaneseq
    %v101 = vshrl.u32 %v100, 7
    %v102 = vsub.s32 %v99, %v101
    %v103 = vrot.slane %v89, %v102
    %v104 = vcombine.high %v80, 0.0
    %v105 = vcombine.high %v87, 0.0
    %v106 = vcombine.high %v96, 0.0
    %v107 = vcombine.high %v103, 0.0
    %vm108 = vcmask 60416
    %v109 = vsel %vm108, %v80, -inf
    %110 = vmax.xlane.f32.xlu0 %v109
    %v111 = vpop.xlane.xlu0 %110
    %v112 = vsel %vm108, %v104, -inf
    %113 = vmax.xlane.f32.xlu0 %v112
    %v114 = vpop.xlane.xlu0 %113
    %v115 = vsel %vm108, %v87, -inf
    %116 = vmax.xlane.f32.xlu0 %v115
    %v117 = vpop.xlane.xlu0 %116
    %v118 = vsel %vm108, %v105, -inf
    %119 = vmax.xlane.f32.xlu0 %v118
    %v120 = vpop.xlane.xlu0 %119
    %v121 = vsel %vm108, %v96, -inf
    %122 = vmax.xlane.f32.xlu0 %v121
    %v123 = vpop.xlane.xlu0 %122
    %v124 = vsel %vm108, %v106, -inf
    %125 = vmax.xlane.f32.xlu0 %v124
    %v126 = vpop.xlane.xlu0 %125
    %v127 = vsel %vm108, %v103, -inf
    %128 = vmax.xlane.f32.xlu0 %v127
    %v129 = vpop.xlane.xlu0 %128
    %v130 = vsel %vm108, %v107, -inf
    %131 = vmax.xlane.f32.xlu0 %v130
    %v132 = vpop.xlane.xlu0 %131
    %v141 = vlaneseq
    %v142 = vand.u32 %v141, 127
    %v143 = vlaneseq
    %v144 = vshrl.u32 %v143, 7
    %v145 = vsub.s32 %v142, %v144
    %v146 = vrot.slane %v111, %v145
    %v147 = vlaneseq
    %v148 = vshrl.u32 %v147, 7
    %v149 = vsub.s32 %v142, %v148
    %v150 = vrot.slane %v114, %v149
    %v151 = vlaneseq
    %v152 = vshrl.u32 %v151, 7
    %v153 = vsub.s32 %v142, %v152
    %v154 = vrot.slane %v117, %v153
    %v155 = vlaneseq
    %v156 = vshrl.u32 %v155, 7
    %v157 = vsub.s32 %v142, %v156
    %v158 = vrot.slane %v120, %v157
    %v159 = vlaneseq
    %v160 = vshrl.u32 %v159, 7
    %v161 = vsub.s32 %v142, %v160
    %v162 = vrot.slane %v123, %v161
    %v163 = vlaneseq
    %v164 = vshrl.u32 %v163, 7
    %v165 = vsub.s32 %v142, %v164
    %v166 = vrot.slane %v126, %v165
    %v167 = vlaneseq
    %v168 = vshrl.u32 %v167, 7
    %v169 = vsub.s32 %v142, %v168
    %v170 = vrot.slane %v129, %v169
    %v171 = vlaneseq
    %v172 = vshrl.u32 %v171, 7
    %v173 = vsub.s32 %v142, %v172
    %v174 = vrot.slane %v132, %v173
    %vm175 = vcmask 1041409
    %v176 = vsel %vm175, %v150, %v146
    %vm177 = vcmask 1042434
    %v178 = vsel %vm177, %v154, %v176
    %vm179 = vcmask 1043459
    %v180 = vsel %vm179, %v158, %v178
    %vm181 = vcmask 1044484
    %v182 = vsel %vm181, %v162, %v180
    %vm183 = vcmask 1045509
    %v184 = vsel %vm183, %v166, %v182
    %vm185 = vcmask 1046534
    %v186 = vsel %vm185, %v170, %v184
    %vm187 = vcmask 1047559
    %v188 = vsel %vm187, %v174, %v186
    %vm189 = vcmask 31744
    %v190 = vsel %vm189, %v188, 0
    %vm192 = vcmask 1043456
    %v194 = vsel %vm192, %v24, 0
    %196 = vmatprep.subr.mxu0 0.0
    %197 = vmatpush1.msra.mxu0 0.0
    %198 = vmatprep.subr.mxu0 0.0
    %199 = vmatpush1.msra.mxu0 0.0
    %200 = vmatprep.subr.mxu0 0.0
    %201 = vmatpush1.msra.mxu0 0.0
    %202 = vmatprep.subr.mxu0 0.0
    %203 = vmatpush1.msra.mxu0 0.0
    %204 = vmatprep.subr.mxu0 0.0
    %205 = vmatpush1.msra.mxu0 0.0
    %206 = vmatprep.subr.mxu0 0.0
    %207 = vmatpush1.msra.mxu0 0.0
    %208 = vmatprep.subr.mxu0 0.0
    %209 = vmatpush1.msra.mxu0 0.0
    %210 = vmatprep.subr.mxu0 0.0
    %211 = vmatpush1.msra.mxu0 0.0
    %212 = vmatprep.subr.mxu0 0.0
    %213 = vmatpush1.msra.mxu0 0.0
    %214 = vmatprep.subr.mxu0 0.0
    %215 = vmatpush1.msra.mxu0 0.0
    %216 = vmatprep.subr.mxu0 0.0
    %217 = vmatpush1.msra.mxu0 0.0
    %218 = vmatprep.subr.mxu0 0.0
    %219 = vmatpush1.msra.mxu0 0.0
    %220 = vmatprep.subr.mxu0 0.0
    %221 = vmatpush1.msra.mxu0 0.0
    %222 = vmatprep.subr.mxu0 0.0
    %223 = vmatpush1.msra.mxu0 0.0
    %224 = vmatprep.subr.mxu0 0.0
    %225 = vmatpush1.msra.mxu0 0.0
    %226 = vmatprep.subr.mxu0 0.0
    %227 = vmatpush1.msra.mxu0 %v194
    %228 = vmatprep.subr.mxu0 0.0
    %229 = vmatpush2.msra.mxu0 0.0
    %230 = vmatprep.subr.mxu0 0.0
    %231 = vmatpush2.msra.mxu0 0.0
    %232 = vmatprep.subr.mxu0 0.0
    %233 = vmatpush2.msra.mxu0 0.0
    %234 = vmatprep.subr.mxu0 0.0
    %235 = vmatpush2.msra.mxu0 0.0
    %236 = vmatprep.subr.mxu0 0.0
    %237 = vmatpush2.msra.mxu0 0.0
    %238 = vmatprep.subr.mxu0 0.0
    %239 = vmatpush2.msra.mxu0 0.0
    %240 = vmatprep.subr.mxu0 0.0
    %241 = vmatpush2.msra.mxu0 0.0
    %242 = vmatprep.subr.mxu0 0.0
    %243 = vmatpush2.msra.mxu0 0.0
    %244 = vmatprep.subr.mxu0 0.0
    %245 = vmatpush2.msra.mxu0 0.0
    %246 = vmatprep.subr.mxu0 0.0
    %247 = vmatpush2.msra.mxu0 0.0
    %248 = vmatprep.subr.mxu0 0.0
    %249 = vmatpush2.msra.mxu0 0.0
    %250 = vmatprep.subr.mxu0 0.0
    %251 = vmatpush2.msra.mxu0 0.0
    %252 = vmatprep.subr.mxu0 0.0
    %253 = vmatpush2.msra.mxu0 0.0
    %254 = vmatprep.subr.mxu0 0.0
    %255 = vmatpush2.msra.mxu0 0.0
    %256 = vmatprep.subr.mxu0 0.0
    %257 = vmatpush2.msra.mxu0 0.0
    %258 = vmatprep.subr.mxu0 0.0
    %259 = vmatpush2.msra.mxu0 0.0
    %260 = vmatprep.mubr.f32.mxu0 0.0
    %261 = vmatmul.mubr.f32.gmra.mxu0 %v190
    %v262 = vpop.f32.mrf.mxu0
    %v263 = vadd.f32 0.0, %v262
    %v264 = vpop.f32.mrf.mxu0
    %265 = vdwg.mxu0
    %v266 = vsub.f32 %v29, %v263
    %v267 = vmul.f32 %v266, 1.442695
    %v268 = vpow.pop %v267
    %vm269 = vcmask 261120
    %v271 = vsel %vm269, %v268, 0
    %273 = vmatprep.subr.mxu0 0.0
    %274 = vmatpush1.msra.mxu0 0.0
    %275 = vmatprep.subr.mxu0 0.0
    %276 = vmatpush1.msra.mxu0 0.0
    %277 = vmatprep.subr.mxu0 0.0
    %278 = vmatpush1.msra.mxu0 0.0
    %279 = vmatprep.subr.mxu0 0.0
    %280 = vmatpush1.msra.mxu0 0.0
    %281 = vmatprep.subr.mxu0 0.0
    %282 = vmatpush1.msra.mxu0 0.0
    %283 = vmatprep.subr.mxu0 0.0
    %284 = vmatpush1.msra.mxu0 0.0
    %285 = vmatprep.subr.mxu0 0.0
    %286 = vmatpush1.msra.mxu0 0.0
    %287 = vmatprep.subr.mxu0 0.0
    %288 = vmatpush1.msra.mxu0 0.0
    %289 = vmatprep.subr.mxu0 0.0
    %290 = vmatpush1.msra.mxu0 0.0
    %291 = vmatprep.subr.mxu0 0.0
    %292 = vmatpush1.msra.mxu0 0.0
    %293 = vmatprep.subr.mxu0 0.0
    %294 = vmatpush1.msra.mxu0 0.0
    %295 = vmatprep.subr.mxu0 0.0
    %296 = vmatpush1.msra.mxu0 0.0
    %297 = vmatprep.subr.mxu0 0.0
    %298 = vmatpush1.msra.mxu0 %v28
    %299 = vmatprep.subr.mxu0 0.0
    %300 = vmatpush1.msra.mxu0 %v27
    %301 = vmatprep.subr.mxu0 0.0
    %302 = vmatpush1.msra.mxu0 %v26
    %303 = vmatprep.subr.mxu0 0.0
    %304 = vmatpush1.msra.mxu0 %v25
    %305 = vmatprep.subr.mxu0 0.0
    %306 = vmatpush2.msra.mxu0 0.0
    %307 = vmatprep.subr.mxu0 0.0
    %308 = vmatpush2.msra.mxu0 0.0
    %309 = vmatprep.subr.mxu0 0.0
    %310 = vmatpush2.msra.mxu0 0.0
    %311 = vmatprep.subr.mxu0 0.0
    %312 = vmatpush2.msra.mxu0 0.0
    %313 = vmatprep.subr.mxu0 0.0
    %314 = vmatpush2.msra.mxu0 0.0
    %315 = vmatprep.subr.mxu0 0.0
    %316 = vmatpush2.msra.mxu0 0.0
    %317 = vmatprep.subr.mxu0 0.0
    %318 = vmatpush2.msra.mxu0 0.0
    %319 = vmatprep.subr.mxu0 0.0
    %320 = vmatpush2.msra.mxu0 0.0
    %321 = vmatprep.subr.mxu0 0.0
    %322 = vmatpush2.msra.mxu0 0.0
    %323 = vmatprep.subr.mxu0 0.0
    %324 = vmatpush2.msra.mxu0 0.0
    %325 = vmatprep.subr.mxu0 0.0
    %326 = vmatpush2.msra.mxu0 0.0
    %327 = vmatprep.subr.mxu0 0.0
    %328 = vmatpush2.msra.mxu0 0.0
    %329 = vmatprep.subr.mxu0 0.0
    %330 = vmatpush2.msra.mxu0 0.0
    %331 = vmatprep.subr.mxu0 0.0
    %332 = vmatpush2.msra.mxu0 0.0
    %333 = vmatprep.subr.mxu0 0.0
    %334 = vmatpush2.msra.mxu0 0.0
    %335 = vmatprep.subr.mxu0 0.0
    %336 = vmatpush2.msra.mxu0 0.0
    %337 = vmatprep.mubr.f32.mxu0 0.0
    %338 = vmatmul.mubr.f32.gmra.mxu0 %v271
    %v339 = vpop.f32.mrf.mxu0
    %v340 = vadd.f32 0.0, %v339
    %v341 = vpop.f32.mrf.mxu0
    %342 = vdwg.mxu0
    %v343 = vrcp.pop %v340
    %v345 = vsel %vm189, %v343, 0
    %347 = vmatprep.subr.mxu0 0.0
    %348 = vmatpush1.msra.mxu0 0.0
    %349 = vmatprep.subr.mxu0 0.0
    %350 = vmatpush1.msra.mxu0 0.0
    %351 = vmatprep.subr.mxu0 0.0
    %352 = vmatpush1.msra.mxu0 0.0
    %353 = vmatprep.subr.mxu0 0.0
    %354 = vmatpush1.msra.mxu0 0.0
    %355 = vmatprep.subr.mxu0 0.0
    %356 = vmatpush1.msra.mxu0 0.0
    %357 = vmatprep.subr.mxu0 0.0
    %358 = vmatpush1.msra.mxu0 0.0
    %359 = vmatprep.subr.mxu0 0.0
    %360 = vmatpush1.msra.mxu0 0.0
    %361 = vmatprep.subr.mxu0 0.0
    %362 = vmatpush1.msra.mxu0 0.0
    %363 = vmatprep.subr.mxu0 0.0
    %364 = vmatpush1.msra.mxu0 0.0
    %365 = vmatprep.subr.mxu0 0.0
    %366 = vmatpush1.msra.mxu0 0.0
    %367 = vmatprep.subr.mxu0 0.0
    %368 = vmatpush1.msra.mxu0 0.0
    %369 = vmatprep.subr.mxu0 0.0
    %370 = vmatpush1.msra.mxu0 0.0
    %371 = vmatprep.subr.mxu0 0.0
    %372 = vmatpush1.msra.mxu0 0.0
    %373 = vmatprep.subr.mxu0 0.0
    %374 = vmatpush1.msra.mxu0 0.0
    %375 = vmatprep.subr.mxu0 0.0
    %376 = vmatpush1.msra.mxu0 0.0
    %377 = vmatprep.subr.mxu0 0.0
    %378 = vmatpush1.msra.mxu0 %v194
    %379 = vmatprep.subr.mxu0 0.0
    %380 = vmatpush2.msra.mxu0 0.0
    %381 = vmatprep.subr.mxu0 0.0
    %382 = vmatpush2.msra.mxu0 0.0
    %383 = vmatprep.subr.mxu0 0.0
    %384 = vmatpush2.msra.mxu0 0.0
    %385 = vmatprep.subr.mxu0 0.0
    %386 = vmatpush2.msra.mxu0 0.0
    %387 = vmatprep.subr.mxu0 0.0
    %388 = vmatpush2.msra.mxu0 0.0
    %389 = vmatprep.subr.mxu0 0.0
    %390 = vmatpush2.msra.mxu0 0.0
    %391 = vmatprep.subr.mxu0 0.0
    %392 = vmatpush2.msra.mxu0 0.0
    %393 = vmatprep.subr.mxu0 0.0
    %394 = vmatpush2.msra.mxu0 0.0
    %395 = vmatprep.subr.mxu0 0.0
    %396 = vmatpush2.msra.mxu0 0.0
    %397 = vmatprep.subr.mxu0 0.0
    %398 = vmatpush2.msra.mxu0 0.0
    %399 = vmatprep.subr.mxu0 0.0
    %400 = vmatpush2.msra.mxu0 0.0
    %401 = vmatprep.subr.mxu0 0.0
    %402 = vmatpush2.msra.mxu0 0.0
    %403 = vmatprep.subr.mxu0 0.0
    %404 = vmatpush2.msra.mxu0 0.0
    %405 = vmatprep.subr.mxu0 0.0
    %406 = vmatpush2.msra.mxu0 0.0
    %407 = vmatprep.subr.mxu0 0.0
    %408 = vmatpush2.msra.mxu0 0.0
    %409 = vmatprep.subr.mxu0 0.0
    %410 = vmatpush2.msra.mxu0 0.0
    %411 = vmatprep.mubr.f32.mxu0 0.0
    %412 = vmatmul.mubr.f32.gmra.mxu0 %v345
    %v413 = vpop.f32.mrf.mxu0
    %v414 = vadd.f32 0.0, %v413
    %v415 = vpop.f32.mrf.mxu0
    %416 = vdwg.mxu0
    %v417 = vmul.f32 %v268, %v414
    %v418 = vld [vmem:[#allocation2] sm:$0xff]
    %v419 = vld [vmem:[#allocation2 + $0x8] sm:$0xff]
    %v420 = vld [vmem:[#allocation2 + $0x10] sm:$0xff]
    %v421 = vld [vmem:[#allocation2 + $0x18] sm:$0xff]
    %422 = vxpose.xlu0.b32.start [1/16] %v417, 128
    %423 = vxpose.xlu0.b32.cont [2/16] 0.0, 128
    %424 = vxpose.xlu0.b32.cont [3/16] 0.0, 128
    %425 = vxpose.xlu0.b32.cont [4/16] 0.0, 128
    %426 = vxpose.xlu0.b32.cont [5/16] 0.0, 128
    %427 = vxpose.xlu0.b32.cont [6/16] 0.0, 128
    %428 = vxpose.xlu0.b32.cont [7/16] 0.0, 128
    %429 = vxpose.xlu0.b32.cont [8/16] 0.0, 128
    %430 = vxpose.xlu0.b32.cont [9/16] 0.0, 128
    %431 = vxpose.xlu0.b32.cont [10/16] 0.0, 128
    %432 = vxpose.xlu0.b32.cont [11/16] 0.0, 128
    %433 = vxpose.xlu0.b32.cont [12/16] 0.0, 128
    %434 = vxpose.xlu0.b32.cont [13/16] 0.0, 128
    %435 = vxpose.xlu0.b32.cont [14/16] 0.0, 128
    %436 = vxpose.xlu0.b32.cont [15/16] 0.0, 128
    %437 = vxpose.xlu0.b32.end [16/16] 0.0, 128
    %v438 = vpop.trf.xlu0
    %v439 = vpop.trf.xlu0
    %v440 = vpop.trf.xlu0
    %v441 = vpop.trf.xlu0
    %v442 = vpop.trf.xlu0
    %v443 = vpop.trf.xlu0
    %v444 = vpop.trf.xlu0
    %v445 = vpop.trf.xlu0
    %v446 = vpop.trf.xlu0
    %v447 = vpop.trf.xlu0
    %v448 = vpop.trf.xlu0
    %v449 = vpop.trf.xlu0
    %v450 = vpop.trf.xlu0
    %v451 = vpop.trf.xlu0
    %v452 = vpop.trf.xlu0
    %v453 = vpop.trf.xlu0
    %vm454 = vcmask 64512
    %v456 = vsel %vm454, %v438, 0
    %v459 = vsel %vm454, %v439, 0
    %v462 = vsel %vm454, %v440, 0
    %v465 = vsel %vm454, %v441, 0
    %467 = vmatprep.subr.mxu0 0.0
    %468 = vmatpush1.msra.mxu0 0.0
    %469 = vmatprep.subr.mxu0 0.0
    %470 = vmatpush1.msra.mxu0 0.0
    %471 = vmatprep.subr.mxu0 0.0
    %472 = vmatpush1.msra.mxu0 0.0
    %473 = vmatprep.subr.mxu0 0.0
    %474 = vmatpush1.msra.mxu0 0.0
    %475 = vmatprep.subr.mxu0 0.0
    %476 = vmatpush1.msra.mxu0 0.0
    %477 = vmatprep.subr.mxu0 0.0
    %478 = vmatpush1.msra.mxu0 0.0
    %479 = vmatprep.subr.mxu0 0.0
    %480 = vmatpush1.msra.mxu0 0.0
    %481 = vmatprep.subr.mxu0 0.0
    %482 = vmatpush1.msra.mxu0 0.0
    %483 = vmatprep.subr.mxu0 0.0
    %484 = vmatpush1.msra.mxu0 0.0
    %485 = vmatprep.subr.mxu0 0.0
    %486 = vmatpush1.msra.mxu0 0.0
    %487 = vmatprep.subr.mxu0 0.0
    %488 = vmatpush1.msra.mxu0 0.0
    %489 = vmatprep.subr.mxu0 0.0
    %490 = vmatpush1.msra.mxu0 0.0
    %491 = vmatprep.subr.mxu0 0.0
    %492 = vmatpush1.msra.mxu0 0.0
    %493 = vmatprep.subr.mxu0 0.0
    %494 = vmatpush1.msra.mxu0 0.0
    %495 = vmatprep.subr.mxu0 0.0
    %496 = vmatpush1.msra.mxu0 0.0
    %497 = vmatprep.subr.mxu0 0.0
    %498 = vmatpush1.msra.mxu0 %v417
    %499 = vmatprep.subr.mxu0 0.0
    %500 = vmatpush2.msra.mxu0 0.0
    %501 = vmatprep.subr.mxu0 0.0
    %502 = vmatpush2.msra.mxu0 0.0
    %503 = vmatprep.subr.mxu0 0.0
    %504 = vmatpush2.msra.mxu0 0.0
    %505 = vmatprep.subr.mxu0 0.0
    %506 = vmatpush2.msra.mxu0 0.0
    %507 = vmatprep.subr.mxu0 0.0
    %508 = vmatpush2.msra.mxu0 0.0
    %509 = vmatprep.subr.mxu0 0.0
    %510 = vmatpush2.msra.mxu0 0.0
    %511 = vmatprep.subr.mxu0 0.0
    %512 = vmatpush2.msra.mxu0 0.0
    %513 = vmatprep.subr.mxu0 0.0
    %514 = vmatpush2.msra.mxu0 0.0
    %515 = vmatprep.subr.mxu0 0.0
    %516 = vmatpush2.msra.mxu0 0.0
    %517 = vmatprep.subr.mxu0 0.0
    %518 = vmatpush2.msra.mxu0 0.0
    %519 = vmatprep.subr.mxu0 0.0
    %520 = vmatpush2.msra.mxu0 0.0
    %521 = vmatprep.subr.mxu0 0.0
    %522 = vmatpush2.msra.mxu0 0.0
    %523 = vmatprep.subr.mxu0 0.0
    %524 = vmatpush2.msra.mxu0 0.0
    %525 = vmatprep.subr.mxu0 0.0
    %526 = vmatpush2.msra.mxu0 0.0
    %527 = vmatprep.subr.mxu0 0.0
    %528 = vmatpush2.msra.mxu0 0.0
    %529 = vmatprep.subr.mxu0 0.0
    %530 = vmatpush2.msra.mxu0 0.0
    %531 = vmatprep.mubr.f32.mxu0 0.0
    %532 = vmatmul.mubr.f32.gmra.mxu0 %v456
    %v533 = vpop.f32.mrf.mxu0
    %v534 = vadd.f32 0.0, %v533
    %v535 = vpop.f32.mrf.mxu0
    %536 = vmatprep.mubr.f32.mxu0 0.0
    %537 = vmatmul.mubr.f32.gmra.mxu0 %v459
    %v538 = vpop.f32.mrf.mxu0
    %v539 = vadd.f32 0.0, %v538
    %v540 = vpop.f32.mrf.mxu0
    %541 = vmatprep.mubr.f32.mxu0 0.0
    %542 = vmatmul.mubr.f32.gmra.mxu0 %v462
    %v543 = vpop.f32.mrf.mxu0
    %v544 = vadd.f32 0.0, %v543
    %v545 = vpop.f32.mrf.mxu0
    %546 = vmatprep.mubr.f32.mxu0 0.0
    %547 = vmatmul.mubr.f32.gmra.mxu0 %v465
    %v548 = vpop.f32.mrf.mxu0
    %v549 = vadd.f32 0.0, %v548
    %v550 = vpop.f32.mrf.mxu0
    %551 = vdwg.mxu0
    %v552 = vadd.f32 %v418, %v534
    %v553 = vadd.f32 %v419, %v539
    %v554 = vadd.f32 %v420, %v544
    %v555 = vadd.f32 %v421, %v549
    %556 = vst.msk [vmem:[#allocation2] sm:$0xff] %vm269, %v552
    %557 = vst.msk [vmem:[#allocation2 + $0x8] sm:$0xff] %vm269, %v553
    %558 = vst.msk [vmem:[#allocation2 + $0x10] sm:$0xff] %vm269, %v554
    %559 = vst.msk [vmem:[#allocation2 + $0x18] sm:$0xff] %vm269, %v555
    // Predicated region
    $region18: #{tpu_custom_call.1} parent=1 // pred_check
      %p560 = pneg %p15
    $region19: #{tpu_custom_call.1} parent=1 // pred_check_branch
      %562 = sbr.rel (%p560) target = $region21
    $region20: #{tpu_custom_call.1} parent=1 // pred_region
      %v563 = vld [vmem:[#allocation2] sm:$0xff]
      %v564 = vld [vmem:[#allocation2 + $0x8] sm:$0xff]
      %v565 = vld [vmem:[#allocation2 + $0x10] sm:$0xff]
      %v566 = vld [vmem:[#allocation2 + $0x18] sm:$0xff]
      %v567 = vmul.f32 %v563, 0.125
      %v568 = vmul.f32 %v564, 0.125
      %v569 = vmul.f32 %v565, 0.125
      %v570 = vmul.f32 %v566, 0.125
      %v571 = vsel %vm269, %v567, 0.0
      %572 = vadd.xlane.f32.xlu0 %v571
      %v573 = vpop.xlane.xlu0 %572
      %v574 = vsel %vm269, %v568, 0.0
      %575 = vadd.xlane.f32.xlu0 %v574
      %v576 = vpop.xlane.xlu0 %575
      %v577 = vsel %vm269, %v569, 0.0
      %578 = vadd.xlane.f32.xlu0 %v577
      %v579 = vpop.xlane.xlu0 %578
      %v580 = vsel %vm269, %v570, 0.0
      %581 = vadd.xlane.f32.xlu0 %v580
      %v582 = vpop.xlane.xlu0 %581
      %v583 = vmul.f32 %v573, 0.25
      %v584 = vmul.f32 %v576, 0.25
      %v585 = vmul.f32 %v579, 0.25
      %v586 = vmul.f32 %v582, 0.25
      %v587 = vlog2.pop %v583
      %v588 = vmul.f32 %v587, 0.6931472
      %v589 = vlog2.pop %v584
      %v590 = vmul.f32 %v589, 0.6931472
      %v591 = vlog2.pop %v585
      %v592 = vmul.f32 %v591, 0.6931472
      %v593 = vlog2.pop %v586
      %v594 = vmul.f32 %v593, 0.6931472
      %v595 = vadd.f32 %v571, %v574
      %v596 = vadd.f32 %v595, %v577
      %v597 = vadd.f32 %v596, %v580
      %v598 = vrot.slane %v597, 4
      %v599 = vadd.f32 %v597, %v598
      %v600 = vrot.slane %v599, 2
      %v601 = vadd.f32 %v599, %v600
      %v602 = vrot.slane %v601, 1
      %v603 = vadd.f32 %v601, %v602
      %v604 = vmul.f32 %v603, 0.25
      %v605 = vlog2.pop %v604
      %v606 = vmul.f32 %v605, 0.6931472
      %v607 = vlog2.pop %v567
      %v608 = vmul.f32 %v607, 0.6931472
      %v609 = vlog2.pop %v568
      %v610 = vmul.f32 %v609, 0.6931472
      %v611 = vlog2.pop %v569
      %v612 = vmul.f32 %v611, 0.6931472
      %v613 = vlog2.pop %v570
      %v614 = vmul.f32 %v613, 0.6931472
      %v615 = vmul.f32 %v567, %v608
      %v616 = vmul.f32 %v568, %v610
      %v617 = vmul.f32 %v569, %v612
      %v618 = vmul.f32 %v570, %v614
      %v619 = vsel %vm269, %v24, 0
      %621 = vmatprep.subr.mxu0 0.0
      %622 = vmatpush1.msra.mxu0 0.0
      %623 = vmatprep.subr.mxu0 0.0
      %624 = vmatpush1.msra.mxu0 0.0
      %625 = vmatprep.subr.mxu0 0.0
      %626 = vmatpush1.msra.mxu0 0.0
      %627 = vmatprep.subr.mxu0 0.0
      %628 = vmatpush1.msra.mxu0 0.0
      %629 = vmatprep.subr.mxu0 0.0
      %630 = vmatpush1.msra.mxu0 0.0
      %631 = vmatprep.subr.mxu0 0.0
      %632 = vmatpush1.msra.mxu0 0.0
      %633 = vmatprep.subr.mxu0 0.0
      %634 = vmatpush1.msra.mxu0 0.0
      %635 = vmatprep.subr.mxu0 0.0
      %636 = vmatpush1.msra.mxu0 0.0
      %637 = vmatprep.subr.mxu0 0.0
      %638 = vmatpush1.msra.mxu0 0.0
      %639 = vmatprep.subr.mxu0 0.0
      %640 = vmatpush1.msra.mxu0 0.0
      %641 = vmatprep.subr.mxu0 0.0
      %642 = vmatpush1.msra.mxu0 0.0
      %643 = vmatprep.subr.mxu0 0.0
      %644 = vmatpush1.msra.mxu0 0.0
      %645 = vmatprep.subr.mxu0 0.0
      %646 = vmatpush1.msra.mxu0 %v618
      %647 = vmatprep.subr.mxu0 0.0
      %648 = vmatpush1.msra.mxu0 %v617
      %649 = vmatprep.subr.mxu0 0.0
      %650 = vmatpush1.msra.mxu0 %v616
      %651 = vmatprep.subr.mxu0 0.0
      %652 = vmatpush1.msra.mxu0 %v615
      %653 = vmatprep.subr.mxu0 0.0
      %654 = vmatpush2.msra.mxu0 0.0
      %655 = vmatprep.subr.mxu0 0.0
      %656 = vmatpush2.msra.mxu0 0.0
      %657 = vmatprep.subr.mxu0 0.0
      %658 = vmatpush2.msra.mxu0 0.0
      %659 = vmatprep.subr.mxu0 0.0
      %660 = vmatpush2.msra.mxu0 0.0
      %661 = vmatprep.subr.mxu0 0.0
      %662 = vmatpush2.msra.mxu0 0.0
      %663 = vmatprep.subr.mxu0 0.0
      %664 = vmatpush2.msra.mxu0 0.0
      %665 = vmatprep.subr.mxu0 0.0
      %666 = vmatpush2.msra.mxu0 0.0
      %667 = vmatprep.subr.mxu0 0.0
      %668 = vmatpush2.msra.mxu0 0.0
      %669 = vmatprep.subr.mxu0 0.0
      %670 = vmatpush2.msra.mxu0 0.0
      %671 = vmatprep.subr.mxu0 0.0
      %672 = vmatpush2.msra.mxu0 0.0
      %673 = vmatprep.subr.mxu0 0.0
      %674 = vmatpush2.msra.mxu0 0.0
      %675 = vmatprep.subr.mxu0 0.0
      %676 = vmatpush2.msra.mxu0 0.0
      %677 = vmatprep.subr.mxu0 0.0
      %678 = vmatpush2.msra.mxu0 0.0
      %679 = vmatprep.subr.mxu0 0.0
      %680 = vmatpush2.msra.mxu0 0.0
      %681 = vmatprep.subr.mxu0 0.0
      %682 = vmatpush2.msra.mxu0 0.0
      %683 = vmatprep.subr.mxu0 0.0
      %684 = vmatpush2.msra.mxu0 0.0
      %685 = vmatprep.mubr.f32.mxu0 0.0
      %686 = vmatmul.mubr.f32.gmra.mxu0 %v619
      %v687 = vpop.f32.mrf.mxu0
      %v688 = vadd.f32 0.0, %v687
      %v689 = vpop.f32.mrf.mxu0
      %690 = vdwg.mxu0
      %v692 = vsel %vm269, %v688, 0
      %694 = vmatprep.subr.mxu0 0.0
      %695 = vmatpush1.msra.mxu0 0.0
      %696 = vmatprep.subr.mxu0 0.0
      %697 = vmatpush1.msra.mxu0 0.0
      %698 = vmatprep.subr.mxu0 0.0
      %699 = vmatpush1.msra.mxu0 0.0
      %700 = vmatprep.subr.mxu0 0.0
      %701 = vmatpush1.msra.mxu0 0.0
      %702 = vmatprep.subr.mxu0 0.0
      %703 = vmatpush1.msra.mxu0 0.0
      %704 = vmatprep.subr.mxu0 0.0
      %705 = vmatpush1.msra.mxu0 0.0
      %706 = vmatprep.subr.mxu0 0.0
      %707 = vmatpush1.msra.mxu0 0.0
      %708 = vmatprep.subr.mxu0 0.0
      %709 = vmatpush1.msra.mxu0 0.0
      %710 = vmatprep.subr.mxu0 0.0
      %711 = vmatpush1.msra.mxu0 0.0
      %712 = vmatprep.subr.mxu0 0.0
      %713 = vmatpush1.msra.mxu0 0.0
      %714 = vmatprep.subr.mxu0 0.0
      %715 = vmatpush1.msra.mxu0 0.0
      %716 = vmatprep.subr.mxu0 0.0
      %717 = vmatpush1.msra.mxu0 0.0
      %718 = vmatprep.subr.mxu0 0.0
      %719 = vmatpush1.msra.mxu0 %v28
      %720 = vmatprep.subr.mxu0 0.0
      %721 = vmatpush1.msra.mxu0 %v27
      %722 = vmatprep.subr.mxu0 0.0
      %723 = vmatpush1.msra.mxu0 %v26
      %724 = vmatprep.subr.mxu0 0.0
      %725 = vmatpush1.msra.mxu0 %v25
      %726 = vmatprep.subr.mxu0 0.0
      %727 = vmatpush2.msra.mxu0 0.0
      %728 = vmatprep.subr.mxu0 0.0
      %729 = vmatpush2.msra.mxu0 0.0
      %730 = vmatprep.subr.mxu0 0.0
      %731 = vmatpush2.msra.mxu0 0.0
      %732 = vmatprep.subr.mxu0 0.0
      %733 = vmatpush2.msra.mxu0 0.0
      %734 = vmatprep.subr.mxu0 0.0
      %735 = vmatpush2.msra.mxu0 0.0
      %736 = vmatprep.subr.mxu0 0.0
      %737 = vmatpush2.msra.mxu0 0.0
      %738 = vmatprep.subr.mxu0 0.0
      %739 = vmatpush2.msra.mxu0 0.0
      %740 = vmatprep.subr.mxu0 0.0
      %741 = vmatpush2.msra.mxu0 0.0
      %742 = vmatprep.subr.mxu0 0.0
      %743 = vmatpush2.msra.mxu0 0.0
      %744 = vmatprep.subr.mxu0 0.0
      %745 = vmatpush2.msra.mxu0 0.0
      %746 = vmatprep.subr.mxu0 0.0
      %747 = vmatpush2.msra.mxu0 0.0
      %748 = vmatprep.subr.mxu0 0.0
      %749 = vmatpush2.msra.mxu0 0.0
      %750 = vmatprep.subr.mxu0 0.0
      %751 = vmatpush2.msra.mxu0 0.0
      %752 = vmatprep.subr.mxu0 0.0
      %753 = vmatpush2.msra.mxu0 0.0
      %754 = vmatprep.subr.mxu0 0.0
      %755 = vmatpush2.msra.mxu0 0.0
      %756 = vmatprep.subr.mxu0 0.0
      %757 = vmatpush2.msra.mxu0 0.0
      %758 = vmatprep.mubr.f32.mxu0 0.0
      %759 = vmatmul.mubr.f32.gmra.mxu0 %v692
      %v760 = vpop.f32.mrf.mxu0
      %v761 = vadd.f32 0.0, %v760
      %v762 = vpop.f32.mrf.mxu0
      %763 = vdwg.mxu0
      %v765 = vsel %vm269, %v567, 0
      %v768 = vsel %vm269, %v568, 0
      %v771 = vsel %vm269, %v569, 0
      %v774 = vsel %vm269, %v570, 0
      %776 = vmatprep.subr.mxu0 0.0
      %777 = vmatpush1.msra.mxu0 0.0
      %778 = vmatprep.subr.mxu0 0.0
      %779 = vmatpush1.msra.mxu0 0.0
      %780 = vmatprep.subr.mxu0 0.0
      %781 = vmatpush1.msra.mxu0 0.0
      %782 = vmatprep.subr.mxu0 0.0
      %783 = vmatpush1.msra.mxu0 0.0
      %784 = vmatprep.subr.mxu0 0.0
      %785 = vmatpush1.msra.mxu0 0.0
      %786 = vmatprep.subr.mxu0 0.0
      %787 = vmatpush1.msra.mxu0 0.0
      %788 = vmatprep.subr.mxu0 0.0
      %789 = vmatpush1.msra.mxu0 0.0
      %790 = vmatprep.subr.mxu0 0.0
      %791 = vmatpush1.msra.mxu0 0.0
      %792 = vmatprep.subr.mxu0 0.0
      %793 = vmatpush1.msra.mxu0 0.0
      %794 = vmatprep.subr.mxu0 0.0
      %795 = vmatpush1.msra.mxu0 0.0
      %796 = vmatprep.subr.mxu0 0.0
      %797 = vmatpush1.msra.mxu0 0.0
      %798 = vmatprep.subr.mxu0 0.0
      %799 = vmatpush1.msra.mxu0 0.0
      %800 = vmatprep.subr.mxu0 0.0
      %801 = vmatpush1.msra.mxu0 %v28
      %802 = vmatprep.subr.mxu0 0.0
      %803 = vmatpush1.msra.mxu0 %v27
      %804 = vmatprep.subr.mxu0 0.0
      %805 = vmatpush1.msra.mxu0 %v26
      %806 = vmatprep.subr.mxu0 0.0
      %807 = vmatpush1.msra.mxu0 %v25
      %808 = vmatprep.subr.mxu0 0.0
      %809 = vmatpush2.msra.mxu0 0.0
      %810 = vmatprep.subr.mxu0 0.0
      %811 = vmatpush2.msra.mxu0 0.0
      %812 = vmatprep.subr.mxu0 0.0
      %813 = vmatpush2.msra.mxu0 0.0
      %814 = vmatprep.subr.mxu0 0.0
      %815 = vmatpush2.msra.mxu0 0.0
      %816 = vmatprep.subr.mxu0 0.0
      %817 = vmatpush2.msra.mxu0 0.0
      %818 = vmatprep.subr.mxu0 0.0
      %819 = vmatpush2.msra.mxu0 0.0
      %820 = vmatprep.subr.mxu0 0.0
      %821 = vmatpush2.msra.mxu0 0.0
      %822 = vmatprep.subr.mxu0 0.0
      %823 = vmatpush2.msra.mxu0 0.0
      %824 = vmatprep.subr.mxu0 0.0
      %825 = vmatpush2.msra.mxu0 0.0
      %826 = vmatprep.subr.mxu0 0.0
      %827 = vmatpush2.msra.mxu0 0.0
      %828 = vmatprep.subr.mxu0 0.0
      %829 = vmatpush2.msra.mxu0 0.0
      %830 = vmatprep.subr.mxu0 0.0
      %831 = vmatpush2.msra.mxu0 0.0
      %832 = vmatprep.subr.mxu0 0.0
      %833 = vmatpush2.msra.mxu0 0.0
      %834 = vmatprep.subr.mxu0 0.0
      %835 = vmatpush2.msra.mxu0 0.0
      %836 = vmatprep.subr.mxu0 0.0
      %837 = vmatpush2.msra.mxu0 0.0
      %838 = vmatprep.subr.mxu0 0.0
      %839 = vmatpush2.msra.mxu0 0.0
      %840 = vmatprep.mubr.f32.mxu0 0.0
      %841 = vmatmul.mubr.f32.gmra.mxu0 %v765
      %v842 = vpop.f32.mrf.mxu0
      %v843 = vadd.f32 0.0, %v842
      %v844 = vpop.f32.mrf.mxu0
      %845 = vmatprep.mubr.f32.mxu0 0.0
      %846 = vmatmul.mubr.f32.gmra.mxu0 %v768
      %v847 = vpop.f32.mrf.mxu0
      %v848 = vadd.f32 0.0, %v847
      %v849 = vpop.f32.mrf.mxu0
      %850 = vmatprep.mubr.f32.mxu0 0.0
      %851 = vmatmul.mubr.f32.gmra.mxu0 %v771
      %v852 = vpop.f32.mrf.mxu0
      %v853 = vadd.f32 0.0, %v852
      %v854 = vpop.f32.mrf.mxu0
      %855 = vmatprep.mubr.f32.mxu0 0.0
      %856 = vmatmul.mubr.f32.gmra.mxu0 %v774
      %v857 = vpop.f32.mrf.mxu0
      %v858 = vadd.f32 0.0, %v857
      %v859 = vpop.f32.mrf.mxu0
      %860 = vdwg.mxu0
      %v861 = vmul.f32 %v588, %v843
      %v862 = vmul.f32 %v590, %v848
      %v863 = vmul.f32 %v592, %v853
      %v864 = vmul.f32 %v594, %v858
      %865 = vmatprep.subr.mxu0 0.0
      %866 = vmatpush1.msra.mxu0 0.0
      %867 = vmatprep.subr.mxu0 0.0
      %868 = vmatpush1.msra.mxu0 0.0
      %869 = vmatprep.subr.mxu0 0.0
      %870 = vmatpush1.msra.mxu0 0.0
      %871 = vmatprep.subr.mxu0 0.0
      %872 = vmatpush1.msra.mxu0 0.0
      %873 = vmatprep.subr.mxu0 0.0
      %874 = vmatpush1.msra.mxu0 0.0
      %875 = vmatprep.subr.mxu0 0.0
      %876 = vmatpush1.msra.mxu0 0.0
      %877 = vmatprep.subr.mxu0 0.0
      %878 = vmatpush1.msra.mxu0 0.0
      %879 = vmatprep.subr.mxu0 0.0
      %880 = vmatpush1.msra.mxu0 0.0
      %881 = vmatprep.subr.mxu0 0.0
      %882 = vmatpush1.msra.mxu0 0.0
      %883 = vmatprep.subr.mxu0 0.0
      %884 = vmatpush1.msra.mxu0 0.0
      %885 = vmatprep.subr.mxu0 0.0
      %886 = vmatpush1.msra.mxu0 0.0
      %887 = vmatprep.subr.mxu0 0.0
      %888 = vmatpush1.msra.mxu0 0.0
      %889 = vmatprep.subr.mxu0 0.0
      %890 = vmatpush1.msra.mxu0 %v864
      %891 = vmatprep.subr.mxu0 0.0
      %892 = vmatpush1.msra.mxu0 %v863
      %893 = vmatprep.subr.mxu0 0.0
      %894 = vmatpush1.msra.mxu0 %v862
      %895 = vmatprep.subr.mxu0 0.0
      %896 = vmatpush1.msra.mxu0 %v861
      %897 = vmatprep.subr.mxu0 0.0
      %898 = vmatpush2.msra.mxu0 0.0
      %899 = vmatprep.subr.mxu0 0.0
      %900 = vmatpush2.msra.mxu0 0.0
      %901 = vmatprep.subr.mxu0 0.0
      %902 = vmatpush2.msra.mxu0 0.0
      %903 = vmatprep.subr.mxu0 0.0
      %904 = vmatpush2.msra.mxu0 0.0
      %905 = vmatprep.subr.mxu0 0.0
      %906 = vmatpush2.msra.mxu0 0.0
      %907 = vmatprep.subr.mxu0 0.0
      %908 = vmatpush2.msra.mxu0 0.0
      %909 = vmatprep.subr.mxu0 0.0
      %910 = vmatpush2.msra.mxu0 0.0
      %911 = vmatprep.subr.mxu0 0.0
      %912 = vmatpush2.msra.mxu0 0.0
      %913 = vmatprep.subr.mxu0 0.0
      %914 = vmatpush2.msra.mxu0 0.0
      %915 = vmatprep.subr.mxu0 0.0
      %916 = vmatpush2.msra.mxu0 0.0
      %917 = vmatprep.subr.mxu0 0.0
      %918 = vmatpush2.msra.mxu0 0.0
      %919 = vmatprep.subr.mxu0 0.0
      %920 = vmatpush2.msra.mxu0 0.0
      %921 = vmatprep.subr.mxu0 0.0
      %922 = vmatpush2.msra.mxu0 0.0
      %923 = vmatprep.subr.mxu0 0.0
      %924 = vmatpush2.msra.mxu0 0.0
      %925 = vmatprep.subr.mxu0 0.0
      %926 = vmatpush2.msra.mxu0 0.0
      %927 = vmatprep.subr.mxu0 0.0
      %928 = vmatpush2.msra.mxu0 0.0
      %929 = vmatprep.mubr.f32.mxu0 0.0
      %930 = vmatmul.mubr.f32.gmra.mxu0 %v619
      %v931 = vpop.f32.mrf.mxu0
      %v932 = vadd.f32 0.0, %v931
      %v933 = vpop.f32.mrf.mxu0
      %934 = vdwg.mxu0
      %935 = vmatprep.subr.mxu0 0.0
      %936 = vmatpush1.msra.mxu0 0.0
      %937 = vmatprep.subr.mxu0 0.0
      %938 = vmatpush1.msra.mxu0 0.0
      %939 = vmatprep.subr.mxu0 0.0
      %940 = vmatpush1.msra.mxu0 0.0
      %941 = vmatprep.subr.mxu0 0.0
      %942 = vmatpush1.msra.mxu0 0.0
      %943 = vmatprep.subr.mxu0 0.0
      %944 = vmatpush1.msra.mxu0 0.0
      %945 = vmatprep.subr.mxu0 0.0
      %946 = vmatpush1.msra.mxu0 0.0
      %947 = vmatprep.subr.mxu0 0.0
      %948 = vmatpush1.msra.mxu0 0.0
      %949 = vmatprep.subr.mxu0 0.0
      %950 = vmatpush1.msra.mxu0 0.0
      %951 = vmatprep.subr.mxu0 0.0
      %952 = vmatpush1.msra.mxu0 0.0
      %953 = vmatprep.subr.mxu0 0.0
      %954 = vmatpush1.msra.mxu0 0.0
      %955 = vmatprep.subr.mxu0 0.0
      %956 = vmatpush1.msra.mxu0 0.0
      %957 = vmatprep.subr.mxu0 0.0
      %958 = vmatpush1.msra.mxu0 0.0
      %959 = vmatprep.subr.mxu0 0.0
      %960 = vmatpush1.msra.mxu0 %v570
      %961 = vmatprep.subr.mxu0 0.0
      %962 = vmatpush1.msra.mxu0 %v569
      %963 = vmatprep.subr.mxu0 0.0
      %964 = vmatpush1.msra.mxu0 %v568
      %965 = vmatprep.subr.mxu0 0.0
      %966 = vmatpush1.msra.mxu0 %v567
      %967 = vmatprep.subr.mxu0 0.0
      %968 = vmatpush2.msra.mxu0 0.0
      %969 = vmatprep.subr.mxu0 0.0
      %970 = vmatpush2.msra.mxu0 0.0
      %971 = vmatprep.subr.mxu0 0.0
      %972 = vmatpush2.msra.mxu0 0.0
      %973 = vmatprep.subr.mxu0 0.0
      %974 = vmatpush2.msra.mxu0 0.0
      %975 = vmatprep.subr.mxu0 0.0
      %976 = vmatpush2.msra.mxu0 0.0
      %977 = vmatprep.subr.mxu0 0.0
      %978 = vmatpush2.msra.mxu0 0.0
      %979 = vmatprep.subr.mxu0 0.0
      %980 = vmatpush2.msra.mxu0 0.0
      %981 = vmatprep.subr.mxu0 0.0
      %982 = vmatpush2.msra.mxu0 0.0
      %983 = vmatprep.subr.mxu0 0.0
      %984 = vmatpush2.msra.mxu0 0.0
      %985 = vmatprep.subr.mxu0 0.0
      %986 = vmatpush2.msra.mxu0 0.0
      %987 = vmatprep.subr.mxu0 0.0
      %988 = vmatpush2.msra.mxu0 0.0
      %989 = vmatprep.subr.mxu0 0.0
      %990 = vmatpush2.msra.mxu0 0.0
      %991 = vmatprep.subr.mxu0 0.0
      %992 = vmatpush2.msra.mxu0 0.0
      %993 = vmatprep.subr.mxu0 0.0
      %994 = vmatpush2.msra.mxu0 0.0
      %995 = vmatprep.subr.mxu0 0.0
      %996 = vmatpush2.msra.mxu0 0.0
      %997 = vmatprep.subr.mxu0 0.0
      %998 = vmatpush2.msra.mxu0 0.0
      %999 = vmatprep.mubr.f32.mxu0 0.0
      %1000 = vmatmul.mubr.f32.gmra.mxu0 %v619
      %v1001 = vpop.f32.mrf.mxu0
      %v1002 = vadd.f32 0.0, %v1001
      %v1003 = vpop.f32.mrf.mxu0
      %1004 = vdwg.mxu0
      %v1005 = vmul.f32 %v1002, %v606
      %v1007 = vsel %vm269, %v1005, 0
      %1009 = vmatprep.subr.mxu0 0.0
      %1010 = vmatpush1.msra.mxu0 0.0
      %1011 = vmatprep.subr.mxu0 0.0
      %1012 = vmatpush1.msra.mxu0 0.0
      %1013 = vmatprep.subr.mxu0 0.0
      %1014 = vmatpush1.msra.mxu0 0.0
      %1015 = vmatprep.subr.mxu0 0.0
      %1016 = vmatpush1.msra.mxu0 0.0
      %1017 = vmatprep.subr.mxu0 0.0
      %1018 = vmatpush1.msra.mxu0 0.0
      %1019 = vmatprep.subr.mxu0 0.0
      %1020 = vmatpush1.msra.mxu0 0.0
      %1021 = vmatprep.subr.mxu0 0.0
      %1022 = vmatpush1.msra.mxu0 0.0
      %1023 = vmatprep.subr.mxu0 0.0
      %1024 = vmatpush1.msra.mxu0 0.0
      %1025 = vmatprep.subr.mxu0 0.0
      %1026 = vmatpush1.msra.mxu0 0.0
      %1027 = vmatprep.subr.mxu0 0.0
      %1028 = vmatpush1.msra.mxu0 0.0
      %1029 = vmatprep.subr.mxu0 0.0
      %1030 = vmatpush1.msra.mxu0 0.0
      %1031 = vmatprep.subr.mxu0 0.0
      %1032 = vmatpush1.msra.mxu0 0.0
      %1033 = vmatprep.subr.mxu0 0.0
      %1034 = vmatpush1.msra.mxu0 %v28
      %1035 = vmatprep.subr.mxu0 0.0
      %1036 = vmatpush1.msra.mxu0 %v27
      %1037 = vmatprep.subr.mxu0 0.0
      %1038 = vmatpush1.msra.mxu0 %v26
      %1039 = vmatprep.subr.mxu0 0.0
      %1040 = vmatpush1.msra.mxu0 %v25
      %1041 = vmatprep.subr.mxu0 0.0
      %1042 = vmatpush2.msra.mxu0 0.0
      %1043 = vmatprep.subr.mxu0 0.0
      %1044 = vmatpush2.msra.mxu0 0.0
      %1045 = vmatprep.subr.mxu0 0.0
      %1046 = vmatpush2.msra.mxu0 0.0
      %1047 = vmatprep.subr.mxu0 0.0
      %1048 = vmatpush2.msra.mxu0 0.0
      %1049 = vmatprep.subr.mxu0 0.0
      %1050 = vmatpush2.msra.mxu0 0.0
      %1051 = vmatprep.subr.mxu0 0.0
      %1052 = vmatpush2.msra.mxu0 0.0
      %1053 = vmatprep.subr.mxu0 0.0
      %1054 = vmatpush2.msra.mxu0 0.0
      %1055 = vmatprep.subr.mxu0 0.0
      %1056 = vmatpush2.msra.mxu0 0.0
      %1057 = vmatprep.subr.mxu0 0.0
      %1058 = vmatpush2.msra.mxu0 0.0
      %1059 = vmatprep.subr.mxu0 0.0
      %1060 = vmatpush2.msra.mxu0 0.0
      %1061 = vmatprep.subr.mxu0 0.0
      %1062 = vmatpush2.msra.mxu0 0.0
      %1063 = vmatprep.subr.mxu0 0.0
      %1064 = vmatpush2.msra.mxu0 0.0
      %1065 = vmatprep.subr.mxu0 0.0
      %1066 = vmatpush2.msra.mxu0 0.0
      %1067 = vmatprep.subr.mxu0 0.0
      %1068 = vmatpush2.msra.mxu0 0.0
      %1069 = vmatprep.subr.mxu0 0.0
      %1070 = vmatpush2.msra.mxu0 0.0
      %1071 = vmatprep.subr.mxu0 0.0
      %1072 = vmatpush2.msra.mxu0 0.0
      %1073 = vmatprep.mubr.f32.mxu0 0.0
      %1074 = vmatmul.mubr.f32.gmra.mxu0 %v1007
      %v1075 = vpop.f32.mrf.mxu0
      %v1076 = vadd.f32 0.0, %v1075
      %v1077 = vpop.f32.mrf.mxu0
      %1078 = vdwg.mxu0
      %v1079 = vsub.f32 %v761, %v932
      %v1080 = vsub.f32 %v1079, %v1076
      %v1081 = vsub.f32 0.0, %v1080
      %v1082 = vlaneseq
      %v1083 = vshrl.u32 %v1082, 7
      %vm1084 = vcmp.gt.s32.totalorder %v142, %v1083
      %v1085 = vsel %vm1084, %v1081, 0.0
      %vm1086 = vcmp.ne.f32.partialorder %v1085, 0.0
      %v1087 = vsel %vm1086, 1.0, 0.0
      %vm1088 = vcmask 27648
      %v1089 = vsel %vm1088, %v1087, 0.0
      %1090 = vadd.xlane.f32.xlu0 %v1089
      %v1091 = vpop.xlane.xlu0 %1090
      %v1092 = vrot.slane %v1091, 4
      %v1093 = vadd.f32 %v1091, %v1092
      %v1094 = vrot.slane %v1093, 2
      %v1095 = vadd.f32 %v1093, %v1094
      %v1096 = vrot.slane %v1095, 1
      %v1097 = vadd.f32 %v1095, %v1096
      %s1098 = vtos %v1097
      %v1099 = vsel %vm1088, %v1085, 0.0
      %1100 = vadd.xlane.f32.xlu0 %v1099
      %v1101 = vpop.xlane.xlu0 %1100
      %v1102 = vrot.slane %v1101, 4
      %v1103 = vadd.f32 %v1101, %v1102
      %v1104 = vrot.slane %v1103, 2
      %v1105 = vadd.f32 %v1103, %v1104
      %v1106 = vrot.slane %v1105, 1
      %v1107 = vadd.f32 %v1105, %v1106
      %s1108 = vtos %v1107
      %v1109 = vstv %s1098
      %v1110 = vrcp.pop %v1109
      %s1111 = vtos %v1110
      %s1112 = smul.f32 %s1108, %s1111
      %s1113 = ssub.f32 0.0, %s1112
      %v1114 = vstv %s1113
      %vm1115 = vcmask 0
      %1116 = vst.msk [vmem:[#allocation3] sm:$0x1] %vm1115, %v1114
    $region21: #{tpu_custom_call.1} parent=1 // pred_fallthru
      _
    // Predicated region
    $region22: #{tpu_custom_call.1} parent=1 // pred_check
      _
    $region23: #{tpu_custom_call.1} parent=1 // pred_check_branch
      %1118 = sbr.rel (0) target = $region25
    $region24: #{tpu_custom_call.1} parent=1 // pred_region
      %s1120 = ssub.s32 16, 16
      %1121 = vsyncadd [#allocation4], %s1120
      %s1123 = sshll.u32 [#allocation3], 4
      %s1124 = int_to_ptr.vmem [resolvable:$true] %s1123
      %1126 = dma.vmem_to_hbm [thread:$0]  %s1124, 16, %s3, [#allocation4]
    $region25: #{tpu_custom_call.1} parent=1 // pred_fallthru
      _
    // Predicated region
    $region26: #{tpu_custom_call.1} parent=1 // pred_check
      _
    $region27: #{tpu_custom_call.1} parent=1 // pred_check_branch
      %1128 = sbr.rel (0) target = $region29
    $region28: #{tpu_custom_call.1} parent=1 // pred_region
      %1129 = dma.done [#allocation4], 16
    $region29: #{tpu_custom_call.1} parent=1 // pred_fallthru
      _
    %1130 = vsyncpa [#allocation4], 1

</llo_original>
